<compile_context>
chip_gen: v5e
topology: v5e:2x2
jax: 0.10.0
libtpu: 0.0.40
codegen_flags: <defaults>
</compile_context>

<pallas_src>
import functools

import jax
import jax.numpy as jnp
from jax.experimental import pallas as pl
from jax.experimental.pallas import tpu as pltpu

# ----------------------- configuration (mirrors the module __init__) ------------------
TIMESTEPS = 1000
LATENT_DIM = 16
HIDDEN_DIMS = (32, 32)
SCALAR_HIDDEN_DIMS = (32, 32)
MAX_FREQ = 4.0
NUM_BANDS = 8
FF_STD = 0.2
LEAK_SLOPE = 0.2
T_EMB_DIM = 2 * NUM_BANDS
C_IN = LATENT_DIM + T_EMB_DIM          # 16 + 16 = 32
EPS = 1e-6


def compute_skips():
    skips = []
    for i in range(len(HIDDEN_DIMS)):
        if i == 0:
            skips.append(C_IN == HIDDEN_DIMS[0] and C_IN == SCALAR_HIDDEN_DIMS[0])
        else:
            skips.append(HIDDEN_DIMS[i - 1] == HIDDEN_DIMS[i]
                         and SCALAR_HIDDEN_DIMS[i - 1] == SCALAR_HIDDEN_DIMS[i])
    return tuple(skips)


def _round_up(x, m):
    return ((x + m - 1) // m) * m


# ----------------------------------- Pallas kernel -------------------------------------
def _vn_mlp_kernel(v_ref, si_ref, e_ref,
                   wvqk_ref, ws_ref, wd_ref, bl_ref,
                   whv_ref, whs_ref, bh_ref,
                   out_ref, *, n_layers, skips, slope, c, ld):
    # Per grid step (one batch tile of TB rows):
    #   v_ref   : (3, TB, Ld)    vector part of z, component-major, channels-last
    #   si_ref  : (TB, Ld)       invariant part of z
    #   e_ref   : (TB, E)        Fourier timestep embedding
    #   wvqk_ref: (L, C, 3C)     packed per-layer [Wv | Wq | Wk]
    #   ws_ref  : (L, C, 2C)     packed per-layer [Wsv | Wss]
    #   wd_ref  : (L, C, C)      learned VN-LeakyReLU direction
    #   bl_ref  : (L, 1, 2C)     packed per-layer [b_sv | b_ss]
    #   whv_ref : (C, 3Ld)       head packed [Wv | Wq | Wk]
    #   whs_ref : (C, 2Ld)       head packed [Wsv | Wss]
    #   bh_ref  : (1, 2Ld)       head packed [b_sv | b_ss]
    #   out_ref : (TB, 4Ld)      lane-fused output slab [x | y | z | inv]
    e = e_ref[...]                                                    # (TB, E)
    s = jnp.concatenate([si_ref[...], e], axis=-1)                    # (TB, C)
    # Broadcast the (invariant) timestep embedding into all 3 spatial components,
    # exactly as t_emb_x = emb.unsqueeze(2).repeat(1, 1, 3) in the reference.
    v = [jnp.concatenate([v_ref[i], e], axis=-1) for i in range(3)]   # 3 x (TB, C)

    def hybrid_linear(v3, s_in, Wvqk, Ws, bias, co):
        """VecLinear with fused weights. Returns (3 x (TB,co) vector, (TB,co) scalar)."""
        sp = jnp.dot(s_in, Ws, preferred_element_type=jnp.float32) + bias   # (TB, 2co)
        gate = sp[:, :co]                                                   # (TB, co)
        s_lin = sp[:, co:]                                                  # (TB, co)
        vqk = [jnp.dot(vc, Wvqk, preferred_element_type=jnp.float32)        # 3 x (TB, 3co)
               for vc in v3]
        v_lin = [x[:, :co] * gate for x in vqk]                             # equivariant
        qk = (vqk[0][:, co:2 * co] * vqk[0][:, 2 * co:]                     # invariant
              + vqk[1][:, co:2 * co] * vqk[1][:, 2 * co:]
              + vqk[2][:, co:2 * co] * vqk[2][:, 2 * co:])
        return v_lin, qk + s_lin

    for l in range(n_layers):
        v_lin, s_lin = hybrid_linear(v, s, wvqk_ref[l], ws_ref[l], bl_ref[l], c)

        # VN-LeakyReLU on vectors (learned direction), LeakyReLU on scalars.
        Wd = wd_ref[l]
        d = [jnp.dot(vl, Wd, preferred_element_type=jnp.float32) for vl in v_lin]
        vdot = v_lin[0] * d[0] + v_lin[1] * d[1] + v_lin[2] * d[2]          # (TB, C)
        dsq = d[0] * d[0] + d[1] * d[1] + d[2] * d[2] + EPS                 # (TB, C)
        coef = jnp.where(vdot >= 0.0, 0.0, vdot / dsq)                      # (TB, C)
        v_act = [slope * vl + (1.0 - slope) * (vl - coef * dc)
                 for vl, dc in zip(v_lin, d)]
        s_act = jnp.where(s_lin >= 0.0, s_lin, slope * s_lin)

        if skips[l]:
            v = [va + vo for va, vo in zip(v_act, v)]
            s = s_act + s
        else:
            v = v_act
            s = s_act

    # vn_head: plain VecLinear (no activation)
    v_h, s_h = hybrid_linear(v, s, whv_ref[...], whs_ref[...], bh_ref[...], ld)
    out = jnp.concatenate([v_h[0], v_h[1], v_h[2], s_h], axis=-1)     # (TB, 4*Ld)
    out_ref[...] = out.astype(out_ref.dtype)


# ----------------------------------- JAX glue -------------------------------------------
def fourier_features(t, max_freq, num_bands, std):
    freqs = jnp.exp2(jnp.linspace(0.0, max_freq, num_bands, dtype=jnp.float32))
    steps = t[:, None] * freqs[None, :]
    return jnp.concatenate([jnp.sin(steps), jnp.cos(steps)], axis=-1) * std


def init_params(key):
    C, Ld = C_IN, LATENT_DIM
    n_layers = len(HIDDEN_DIMS)
    assert all(h == C for h in HIDDEN_DIMS) and all(h == C for h in SCALAR_HIDDEN_DIMS), \
        "this kernel packs uniform-width layers"

    kit = iter(jax.random.split(key, 64))

    def uni(shape, fan_in):
        bound = float(fan_in) ** -0.5
        return jax.random.uniform(next(kit), shape, jnp.float32, -bound, bound)

    # Logical layout: WL[l] = [Wv, Wsv, Wq, Wk, Wss, Wd], BL[l] = [b_sv, b_ss]
    WL = jnp.stack([jnp.stack([uni((C, C), C) for _ in range(6)]) for _ in range(n_layers)])
    BL = jnp.stack([jnp.stack([uni((C,), C) for _ in range(2)]) for _ in range(n_layers)])
    WH = jnp.stack([uni((C, Ld), C) for _ in range(5)])   # [Wv, Wsv, Wq, Wk, Wss]
    BH = jnp.stack([uni((Ld,), C) for _ in range(2)])     # [b_sv, b_ss]
    return WL, BL, WH, BH


def pack_params(params):
    """Fuse weights along the output dim into lane-dense matrices for the kernel."""
    WL, BL, WH, BH = params
    WVQK = jnp.concatenate([WL[:, 0], WL[:, 2], WL[:, 3]], axis=-1)    # (L, C, 3C)
    WS = jnp.concatenate([WL[:, 1], WL[:, 4]], axis=-1)                # (L, C, 2C)
    WD = WL[:, 5]                                                      # (L, C, C)
    BLp = jnp.concatenate([BL[:, 0], BL[:, 1]], axis=-1)[:, None, :]   # (L, 1, 2C)
    WHV = jnp.concatenate([WH[0], WH[2], WH[3]], axis=-1)              # (C, 3Ld)
    WHS = jnp.concatenate([WH[1], WH[4]], axis=-1)                     # (C, 2Ld)
    BHp = jnp.concatenate([BH[0], BH[1]], axis=-1)[None, :]            # (1, 2Ld)
    return WVQK, WS, WD, BLp, WHV, WHS, BHp


@functools.partial(jax.jit, static_argnames=("batch_tile",))
def latent_diffusion_forward(packed, z, t, batch_tile=256):
    WVQK, WS, WD, BL, WHV, WHS, BH = packed
    B = z.shape[0]
    C, Ld, E = C_IN, LATENT_DIM, T_EMB_DIM
    n_layers = len(HIDDEN_DIMS)
    skips = compute_skips()

    # t / timesteps, Fourier timestep embedding
    t_norm = t.astype(jnp.float32) / float(TIMESTEPS)
    emb = fourier_features(t_norm, MAX_FREQ, NUM_BANDS, FF_STD)        # (B, E)

    z = z.astype(jnp.float32)
    v_in = jnp.transpose(z[:, :, :3], (2, 0, 1))                       # (3, B, Ld)
    s_in = z[:, :, 3]                                                  # (B, Ld)

    # Batch tile: multiple of 8 sublanes, padded batch, grid over batch tiles.
    TB = min(batch_tile, _round_up(B, 8))
    B_pad = _round_up(B, TB)
    pad = B_pad - B
    if pad:
        v_in = jnp.pad(v_in, ((0, 0), (0, pad), (0, 0)))
        s_in = jnp.pad(s_in, ((0, pad), (0, 0)))
        emb = jnp.pad(emb, ((0, pad), (0, 0)))

    kernel = functools.partial(_vn_mlp_kernel, n_layers=n_layers, skips=skips,
                               slope=LEAK_SLOPE, c=C, ld=Ld)

    out = pl.pallas_call(
        kernel,
        out_shape=jax.ShapeDtypeStruct((B_pad, 4 * Ld), jnp.float32),
        grid_spec=pltpu.PrefetchScalarGridSpec(
            num_scalar_prefetch=0,
            grid=(B_pad // TB,),
            in_specs=[
                pl.BlockSpec((3, TB, Ld), lambda b: (0, b, 0)),
                pl.BlockSpec((TB, Ld), lambda b: (b, 0)),
                pl.BlockSpec((TB, E), lambda b: (b, 0)),
                pl.BlockSpec((n_layers, C, 3 * C), lambda b: (0, 0, 0)),
                pl.BlockSpec((n_layers, C, 2 * C), lambda b: (0, 0, 0)),
                pl.BlockSpec((n_layers, C, C), lambda b: (0, 0, 0)),
                pl.BlockSpec((n_layers, 1, 2 * C), lambda b: (0, 0, 0)),
                pl.BlockSpec((C, 3 * Ld), lambda b: (0, 0)),
                pl.BlockSpec((C, 2 * Ld), lambda b: (0, 0)),
                pl.BlockSpec((1, 2 * Ld), lambda b: (0, 0)),
            ],
            out_specs=pl.BlockSpec((TB, 4 * Ld), lambda b: (b, 0)),
        ),
        compiler_params=pltpu.CompilerParams(
            dimension_semantics=("parallel",)),
    )(v_in, s_in, emb, WVQK, WS, WD, BL, WHV, WHS, BH)

    out = out[:B]                                                      # (B, 4*Ld)
    # [x | y | z | inv] slab -> (B, Ld, 4) in the wrapper (cheap vs in-kernel masked stores)
    pred = jnp.transpose(out.reshape(B, 4, Ld), (0, 2, 1))             # (B, Ld, 4)
    return pred


if __name__ == "__main__":
    key = jax.random.PRNGKey(0)
    kp, kz, kt = jax.random.split(key, 3)
    params = init_params(kp)
    packed = pack_params(params)

    B = 2
    z = jax.random.normal(kz, (B, LATENT_DIM, 4), jnp.float32)         # (B, latent_dim, 4)
    t = jax.random.uniform(kt, (B,), jnp.float32, 0.0, float(TIMESTEPS))

    pred = latent_diffusion_forward(packed, z, t)
    pred = jax.block_until_ready(pred)
    assert pred.shape == (B, LATENT_DIM, 4), pred.shape
    assert pred.dtype == jnp.float32
    print("KERNEL_OK")
</pallas_src>

<mosaic_0001>
module attributes {stable_mosaic.version = 11 : i64} {
  func.func @_vn_mlp_kernel(%arg0: i32, %arg1: memref<3x8x16xf32, #tpu.memory_space<vmem>>, %arg2: memref<8x16xf32, #tpu.memory_space<vmem>>, %arg3: memref<8x16xf32, #tpu.memory_space<vmem>>, %arg4: memref<2x32x96xf32, #tpu.memory_space<vmem>>, %arg5: memref<2x32x64xf32, #tpu.memory_space<vmem>>, %arg6: memref<2x32x32xf32, #tpu.memory_space<vmem>>, %arg7: memref<2x1x64xf32, #tpu.memory_space<vmem>>, %arg8: memref<32x48xf32, #tpu.memory_space<vmem>>, %arg9: memref<32x32xf32, #tpu.memory_space<vmem>>, %arg10: memref<1x32xf32, #tpu.memory_space<vmem>>, %arg11: memref<8x64xf32, #tpu.memory_space<vmem>>) attributes {dimension_semantics = [#tpu.dimension_semantics<parallel>], iteration_bounds = array<i64: 1>, scalar_prefetch = 0 : i64, scratch_operands = 0 : i64, tpu.core_type = #tpu.core_type<tc>, window_params = [{transform_indices = @transform_0, window_bounds = array<i64: 3, 8, 16>}, {transform_indices = @transform_1, window_bounds = array<i64: 8, 16>}, {transform_indices = @transform_2, window_bounds = array<i64: 8, 16>}, {pipeline_mode = #tpu.pipeline_mode<synchronous>, transform_indices = @transform_3, window_bounds = array<i64: 2, 32, 96>}, {pipeline_mode = #tpu.pipeline_mode<synchronous>, transform_indices = @transform_4, window_bounds = array<i64: 2, 32, 64>}, {pipeline_mode = #tpu.pipeline_mode<synchronous>, transform_indices = @transform_5, window_bounds = array<i64: 2, 32, 32>}, {pipeline_mode = #tpu.pipeline_mode<synchronous>, transform_indices = @transform_6, window_bounds = array<i64: 2, 1, 64>}, {pipeline_mode = #tpu.pipeline_mode<synchronous>, transform_indices = @transform_7, window_bounds = array<i64: 32, 48>}, {pipeline_mode = #tpu.pipeline_mode<synchronous>, transform_indices = @transform_8, window_bounds = array<i64: 32, 32>}, {pipeline_mode = #tpu.pipeline_mode<synchronous>, transform_indices = @transform_9, window_bounds = array<i64: 1, 32>}, {transform_indices = @transform_10, window_bounds = array<i64: 8, 64>}]} {
    %c0 = arith.constant 0 : index
    %c0_0 = arith.constant 0 : index
    %0 = vector.load %arg3[%c0, %c0_0] : memref<8x16xf32, #tpu.memory_space<vmem>>, vector<8x16xf32>
    %c0_1 = arith.constant 0 : index
    %c0_2 = arith.constant 0 : index
    %1 = vector.load %arg2[%c0_1, %c0_2] : memref<8x16xf32, #tpu.memory_space<vmem>>, vector<8x16xf32>
    %2 = tpu.concatenate %1, %0 in 1 : vector<8x16xf32>, vector<8x16xf32> -> vector<8x32xf32>
    %c0_3 = arith.constant 0 : index
    %c0_4 = arith.constant 0 : index
    %c0_5 = arith.constant 0 : index
    %3 = vector.load %arg1[%c0_3, %c0_4, %c0_5] : memref<3x8x16xf32, #tpu.memory_space<vmem>>, vector<1x8x16xf32>
    %4 = vector.shape_cast %3 : vector<1x8x16xf32> to vector<8x16xf32>
    %5 = tpu.concatenate %4, %0 in 1 : vector<8x16xf32>, vector<8x16xf32> -> vector<8x32xf32>
    %c1 = arith.constant 1 : index
    %c0_6 = arith.constant 0 : index
    %c0_7 = arith.constant 0 : index
    %6 = vector.load %arg1[%c1, %c0_6, %c0_7] : memref<3x8x16xf32, #tpu.memory_space<vmem>>, vector<1x8x16xf32>
    %7 = vector.shape_cast %6 : vector<1x8x16xf32> to vector<8x16xf32>
    %8 = tpu.concatenate %7, %0 in 1 : vector<8x16xf32>, vector<8x16xf32> -> vector<8x32xf32>
    %c2 = arith.constant 2 : index
    %c0_8 = arith.constant 0 : index
    %c0_9 = arith.constant 0 : index
    %9 = vector.load %arg1[%c2, %c0_8, %c0_9] : memref<3x8x16xf32, #tpu.memory_space<vmem>>, vector<1x8x16xf32>
    %10 = vector.shape_cast %9 : vector<1x8x16xf32> to vector<8x16xf32>
    %11 = tpu.concatenate %10, %0 in 1 : vector<8x16xf32>, vector<8x16xf32> -> vector<8x32xf32>
    %c0_10 = arith.constant 0 : index
    %c0_11 = arith.constant 0 : index
    %c0_12 = arith.constant 0 : index
    %12 = vector.load %arg4[%c0_10, %c0_11, %c0_12] : memref<2x32x96xf32, #tpu.memory_space<vmem>>, vector<1x32x96xf32>
    %13 = vector.shape_cast %12 : vector<1x32x96xf32> to vector<32x96xf32>
    %c0_13 = arith.constant 0 : index
    %c0_14 = arith.constant 0 : index
    %c0_15 = arith.constant 0 : index
    %14 = vector.load %arg5[%c0_13, %c0_14, %c0_15] : memref<2x32x64xf32, #tpu.memory_space<vmem>>, vector<1x32x64xf32>
    %15 = vector.shape_cast %14 : vector<1x32x64xf32> to vector<32x64xf32>
    %c0_16 = arith.constant 0 : index
    %c0_17 = arith.constant 0 : index
    %c0_18 = arith.constant 0 : index
    %16 = vector.load %arg7[%c0_16, %c0_17, %c0_18] : memref<2x1x64xf32, #tpu.memory_space<vmem>>, vector<1x1x64xf32>
    %17 = vector.shape_cast %16 : vector<1x1x64xf32> to vector<1x64xf32>
    %cst = arith.constant dense<0.000000e+00> : vector<8x64xf32>
    %18 = tpu.matmul %2, %15, %cst {dimension_numbers = #tpu.dot_dimension_numbers<[1], [0], [0], [1], [0, 0, 1, 1], [], []>} : vector<8x32xf32>, vector<32x64xf32>, vector<8x64xf32> -> vector<8x64xf32>
    %19 = vector.broadcast %17 : vector<1x64xf32> to vector<8x64xf32>
    %20 = arith.addf %18, %19 : vector<8x64xf32>
    %21 = vector.extract_strided_slice %20 {offsets = [0, 0], sizes = [8, 32], strides = [1, 1]} : vector<8x64xf32> to vector<8x32xf32>
    %22 = vector.extract_strided_slice %20 {offsets = [0, 32], sizes = [8, 32], strides = [1, 1]} : vector<8x64xf32> to vector<8x32xf32>
    %cst_19 = arith.constant dense<0.000000e+00> : vector<8x96xf32>
    %23 = tpu.matmul %5, %13, %cst_19 {dimension_numbers = #tpu.dot_dimension_numbers<[1], [0], [0], [1], [0, 0, 1, 1], [], []>} : vector<8x32xf32>, vector<32x96xf32>, vector<8x96xf32> -> vector<8x96xf32>
    %cst_20 = arith.constant dense<0.000000e+00> : vector<8x96xf32>
    %24 = tpu.matmul %8, %13, %cst_20 {dimension_numbers = #tpu.dot_dimension_numbers<[1], [0], [0], [1], [0, 0, 1, 1], [], []>} : vector<8x32xf32>, vector<32x96xf32>, vector<8x96xf32> -> vector<8x96xf32>
    %cst_21 = arith.constant dense<0.000000e+00> : vector<8x96xf32>
    %25 = tpu.matmul %11, %13, %cst_21 {dimension_numbers = #tpu.dot_dimension_numbers<[1], [0], [0], [1], [0, 0, 1, 1], [], []>} : vector<8x32xf32>, vector<32x96xf32>, vector<8x96xf32> -> vector<8x96xf32>
    %26 = vector.extract_strided_slice %23 {offsets = [0, 0], sizes = [8, 32], strides = [1, 1]} : vector<8x96xf32> to vector<8x32xf32>
    %27 = arith.mulf %26, %21 : vector<8x32xf32>
    %28 = vector.extract_strided_slice %24 {offsets = [0, 0], sizes = [8, 32], strides = [1, 1]} : vector<8x96xf32> to vector<8x32xf32>
    %29 = arith.mulf %28, %21 : vector<8x32xf32>
    %30 = vector.extract_strided_slice %25 {offsets = [0, 0], sizes = [8, 32], strides = [1, 1]} : vector<8x96xf32> to vector<8x32xf32>
    %31 = arith.mulf %30, %21 : vector<8x32xf32>
    %32 = vector.extract_strided_slice %23 {offsets = [0, 32], sizes = [8, 32], strides = [1, 1]} : vector<8x96xf32> to vector<8x32xf32>
    %33 = vector.extract_strided_slice %23 {offsets = [0, 64], sizes = [8, 32], strides = [1, 1]} : vector<8x96xf32> to vector<8x32xf32>
    %34 = arith.mulf %32, %33 : vector<8x32xf32>
    %35 = vector.extract_strided_slice %24 {offsets = [0, 32], sizes = [8, 32], strides = [1, 1]} : vector<8x96xf32> to vector<8x32xf32>
    %36 = vector.extract_strided_slice %24 {offsets = [0, 64], sizes = [8, 32], strides = [1, 1]} : vector<8x96xf32> to vector<8x32xf32>
    %37 = arith.mulf %35, %36 : vector<8x32xf32>
    %38 = arith.addf %34, %37 : vector<8x32xf32>
    %39 = vector.extract_strided_slice %25 {offsets = [0, 32], sizes = [8, 32], strides = [1, 1]} : vector<8x96xf32> to vector<8x32xf32>
    %40 = vector.extract_strided_slice %25 {offsets = [0, 64], sizes = [8, 32], strides = [1, 1]} : vector<8x96xf32> to vector<8x32xf32>
    %41 = arith.mulf %39, %40 : vector<8x32xf32>
    %42 = arith.addf %38, %41 : vector<8x32xf32>
    %43 = arith.addf %42, %22 : vector<8x32xf32>
    %c0_22 = arith.constant 0 : index
    %c0_23 = arith.constant 0 : index
    %c0_24 = arith.constant 0 : index
    %44 = vector.load %arg6[%c0_22, %c0_23, %c0_24] : memref<2x32x32xf32, #tpu.memory_space<vmem>>, vector<1x32x32xf32>
    %45 = vector.shape_cast %44 : vector<1x32x32xf32> to vector<32x32xf32>
    %cst_25 = arith.constant dense<0.000000e+00> : vector<8x32xf32>
    %46 = tpu.matmul %27, %45, %cst_25 {dimension_numbers = #tpu.dot_dimension_numbers<[1], [0], [0], [1], [0, 0, 1, 1], [], []>} : vector<8x32xf32>, vector<32x32xf32>, vector<8x32xf32> -> vector<8x32xf32>
    %cst_26 = arith.constant dense<0.000000e+00> : vector<8x32xf32>
    %47 = tpu.matmul %29, %45, %cst_26 {dimension_numbers = #tpu.dot_dimension_numbers<[1], [0], [0], [1], [0, 0, 1, 1], [], []>} : vector<8x32xf32>, vector<32x32xf32>, vector<8x32xf32> -> vector<8x32xf32>
    %cst_27 = arith.constant dense<0.000000e+00> : vector<8x32xf32>
    %48 = tpu.matmul %31, %45, %cst_27 {dimension_numbers = #tpu.dot_dimension_numbers<[1], [0], [0], [1], [0, 0, 1, 1], [], []>} : vector<8x32xf32>, vector<32x32xf32>, vector<8x32xf32> -> vector<8x32xf32>
    %49 = arith.mulf %27, %46 : vector<8x32xf32>
    %50 = arith.mulf %29, %47 : vector<8x32xf32>
    %51 = arith.addf %49, %50 : vector<8x32xf32>
    %52 = arith.mulf %31, %48 : vector<8x32xf32>
    %53 = arith.addf %51, %52 : vector<8x32xf32>
    %54 = arith.mulf %46, %46 : vector<8x32xf32>
    %55 = arith.mulf %47, %47 : vector<8x32xf32>
    %56 = arith.addf %54, %55 : vector<8x32xf32>
    %57 = arith.mulf %48, %48 : vector<8x32xf32>
    %58 = arith.addf %56, %57 : vector<8x32xf32>
    %cst_28 = arith.constant 9.99999997E-7 : f32
    %59 = vector.broadcast %cst_28 : f32 to vector<8x32xf32>
    %60 = arith.addf %58, %59 : vector<8x32xf32>
    %cst_29 = arith.constant 0.000000e+00 : f32
    %61 = vector.broadcast %cst_29 : f32 to vector<8x32xf32>
    %62 = arith.cmpf oge, %53, %61 : vector<8x32xf32>
    %63 = arith.divf %53, %60 : vector<8x32xf32>
    %cst_30 = arith.constant 0.000000e+00 : f32
    %64 = vector.broadcast %cst_30 : f32 to vector<8x32xf32>
    %65 = arith.select %62, %64, %63 : vector<8x32xi1>, vector<8x32xf32>
    %cst_31 = arith.constant 2.000000e-01 : f32
    %66 = vector.broadcast %cst_31 : f32 to vector<8x32xf32>
    %67 = arith.mulf %66, %27 : vector<8x32xf32>
    %68 = arith.mulf %65, %46 : vector<8x32xf32>
    %69 = arith.subf %27, %68 : vector<8x32xf32>
    %cst_32 = arith.constant 8.000000e-01 : f32
    %70 = vector.broadcast %cst_32 : f32 to vector<8x32xf32>
    %71 = arith.mulf %70, %69 : vector<8x32xf32>
    %72 = arith.addf %67, %71 : vector<8x32xf32>
    %cst_33 = arith.constant 2.000000e-01 : f32
    %73 = vector.broadcast %cst_33 : f32 to vector<8x32xf32>
    %74 = arith.mulf %73, %29 : vector<8x32xf32>
    %75 = arith.mulf %65, %47 : vector<8x32xf32>
    %76 = arith.subf %29, %75 : vector<8x32xf32>
    %cst_34 = arith.constant 8.000000e-01 : f32
    %77 = vector.broadcast %cst_34 : f32 to vector<8x32xf32>
    %78 = arith.mulf %77, %76 : vector<8x32xf32>
    %79 = arith.addf %74, %78 : vector<8x32xf32>
    %cst_35 = arith.constant 2.000000e-01 : f32
    %80 = vector.broadcast %cst_35 : f32 to vector<8x32xf32>
    %81 = arith.mulf %80, %31 : vector<8x32xf32>
    %82 = arith.mulf %65, %48 : vector<8x32xf32>
    %83 = arith.subf %31, %82 : vector<8x32xf32>
    %cst_36 = arith.constant 8.000000e-01 : f32
    %84 = vector.broadcast %cst_36 : f32 to vector<8x32xf32>
    %85 = arith.mulf %84, %83 : vector<8x32xf32>
    %86 = arith.addf %81, %85 : vector<8x32xf32>
    %cst_37 = arith.constant 0.000000e+00 : f32
    %87 = vector.broadcast %cst_37 : f32 to vector<8x32xf32>
    %88 = arith.cmpf oge, %43, %87 : vector<8x32xf32>
    %cst_38 = arith.constant 2.000000e-01 : f32
    %89 = vector.broadcast %cst_38 : f32 to vector<8x32xf32>
    %90 = arith.mulf %89, %43 : vector<8x32xf32>
    %91 = arith.select %88, %43, %90 : vector<8x32xi1>, vector<8x32xf32>
    %92 = arith.addf %72, %5 : vector<8x32xf32>
    %93 = arith.addf %79, %8 : vector<8x32xf32>
    %94 = arith.addf %86, %11 : vector<8x32xf32>
    %95 = arith.addf %91, %2 : vector<8x32xf32>
    %c1_39 = arith.constant 1 : index
    %c0_40 = arith.constant 0 : index
    %c0_41 = arith.constant 0 : index
    %96 = vector.load %arg4[%c1_39, %c0_40, %c0_41] : memref<2x32x96xf32, #tpu.memory_space<vmem>>, vector<1x32x96xf32>
    %97 = vector.shape_cast %96 : vector<1x32x96xf32> to vector<32x96xf32>
    %c1_42 = arith.constant 1 : index
    %c0_43 = arith.constant 0 : index
    %c0_44 = arith.constant 0 : index
    %98 = vector.load %arg5[%c1_42, %c0_43, %c0_44] : memref<2x32x64xf32, #tpu.memory_space<vmem>>, vector<1x32x64xf32>
    %99 = vector.shape_cast %98 : vector<1x32x64xf32> to vector<32x64xf32>
    %c1_45 = arith.constant 1 : index
    %c0_46 = arith.constant 0 : index
    %c0_47 = arith.constant 0 : index
    %100 = vector.load %arg7[%c1_45, %c0_46, %c0_47] : memref<2x1x64xf32, #tpu.memory_space<vmem>>, vector<1x1x64xf32>
    %101 = vector.shape_cast %100 : vector<1x1x64xf32> to vector<1x64xf32>
    %cst_48 = arith.constant dense<0.000000e+00> : vector<8x64xf32>
    %102 = tpu.matmul %95, %99, %cst_48 {dimension_numbers = #tpu.dot_dimension_numbers<[1], [0], [0], [1], [0, 0, 1, 1], [], []>} : vector<8x32xf32>, vector<32x64xf32>, vector<8x64xf32> -> vector<8x64xf32>
    %103 = vector.broadcast %101 : vector<1x64xf32> to vector<8x64xf32>
    %104 = arith.addf %102, %103 : vector<8x64xf32>
    %105 = vector.extract_strided_slice %104 {offsets = [0, 0], sizes = [8, 32], strides = [1, 1]} : vector<8x64xf32> to vector<8x32xf32>
    %106 = vector.extract_strided_slice %104 {offsets = [0, 32], sizes = [8, 32], strides = [1, 1]} : vector<8x64xf32> to vector<8x32xf32>
    %cst_49 = arith.constant dense<0.000000e+00> : vector<8x96xf32>
    %107 = tpu.matmul %92, %97, %cst_49 {dimension_numbers = #tpu.dot_dimension_numbers<[1], [0], [0], [1], [0, 0, 1, 1], [], []>} : vector<8x32xf32>, vector<32x96xf32>, vector<8x96xf32> -> vector<8x96xf32>
    %cst_50 = arith.constant dense<0.000000e+00> : vector<8x96xf32>
    %108 = tpu.matmul %93, %97, %cst_50 {dimension_numbers = #tpu.dot_dimension_numbers<[1], [0], [0], [1], [0, 0, 1, 1], [], []>} : vector<8x32xf32>, vector<32x96xf32>, vector<8x96xf32> -> vector<8x96xf32>
    %cst_51 = arith.constant dense<0.000000e+00> : vector<8x96xf32>
    %109 = tpu.matmul %94, %97, %cst_51 {dimension_numbers = #tpu.dot_dimension_numbers<[1], [0], [0], [1], [0, 0, 1, 1], [], []>} : vector<8x32xf32>, vector<32x96xf32>, vector<8x96xf32> -> vector<8x96xf32>
    %110 = vector.extract_strided_slice %107 {offsets = [0, 0], sizes = [8, 32], strides = [1, 1]} : vector<8x96xf32> to vector<8x32xf32>
    %111 = arith.mulf %110, %105 : vector<8x32xf32>
    %112 = vector.extract_strided_slice %108 {offsets = [0, 0], sizes = [8, 32], strides = [1, 1]} : vector<8x96xf32> to vector<8x32xf32>
    %113 = arith.mulf %112, %105 : vector<8x32xf32>
    %114 = vector.extract_strided_slice %109 {offsets = [0, 0], sizes = [8, 32], strides = [1, 1]} : vector<8x96xf32> to vector<8x32xf32>
    %115 = arith.mulf %114, %105 : vector<8x32xf32>
    %116 = vector.extract_strided_slice %107 {offsets = [0, 32], sizes = [8, 32], strides = [1, 1]} : vector<8x96xf32> to vector<8x32xf32>
    %117 = vector.extract_strided_slice %107 {offsets = [0, 64], sizes = [8, 32], strides = [1, 1]} : vector<8x96xf32> to vector<8x32xf32>
    %118 = arith.mulf %116, %117 : vector<8x32xf32>
    %119 = vector.extract_strided_slice %108 {offsets = [0, 32], sizes = [8, 32], strides = [1, 1]} : vector<8x96xf32> to vector<8x32xf32>
    %120 = vector.extract_strided_slice %108 {offsets = [0, 64], sizes = [8, 32], strides = [1, 1]} : vector<8x96xf32> to vector<8x32xf32>
    %121 = arith.mulf %119, %120 : vector<8x32xf32>
    %122 = arith.addf %118, %121 : vector<8x32xf32>
    %123 = vector.extract_strided_slice %109 {offsets = [0, 32], sizes = [8, 32], strides = [1, 1]} : vector<8x96xf32> to vector<8x32xf32>
    %124 = vector.extract_strided_slice %109 {offsets = [0, 64], sizes = [8, 32], strides = [1, 1]} : vector<8x96xf32> to vector<8x32xf32>
    %125 = arith.mulf %123, %124 : vector<8x32xf32>
    %126 = arith.addf %122, %125 : vector<8x32xf32>
    %127 = arith.addf %126, %106 : vector<8x32xf32>
    %c1_52 = arith.constant 1 : index
    %c0_53 = arith.constant 0 : index
    %c0_54 = arith.constant 0 : index
    %128 = vector.load %arg6[%c1_52, %c0_53, %c0_54] : memref<2x32x32xf32, #tpu.memory_space<vmem>>, vector<1x32x32xf32>
    %129 = vector.shape_cast %128 : vector<1x32x32xf32> to vector<32x32xf32>
    %cst_55 = arith.constant dense<0.000000e+00> : vector<8x32xf32>
    %130 = tpu.matmul %111, %129, %cst_55 {dimension_numbers = #tpu.dot_dimension_numbers<[1], [0], [0], [1], [0, 0, 1, 1], [], []>} : vector<8x32xf32>, vector<32x32xf32>, vector<8x32xf32> -> vector<8x32xf32>
    %cst_56 = arith.constant dense<0.000000e+00> : vector<8x32xf32>
    %131 = tpu.matmul %113, %129, %cst_56 {dimension_numbers = #tpu.dot_dimension_numbers<[1], [0], [0], [1], [0, 0, 1, 1], [], []>} : vector<8x32xf32>, vector<32x32xf32>, vector<8x32xf32> -> vector<8x32xf32>
    %cst_57 = arith.constant dense<0.000000e+00> : vector<8x32xf32>
    %132 = tpu.matmul %115, %129, %cst_57 {dimension_numbers = #tpu.dot_dimension_numbers<[1], [0], [0], [1], [0, 0, 1, 1], [], []>} : vector<8x32xf32>, vector<32x32xf32>, vector<8x32xf32> -> vector<8x32xf32>
    %133 = arith.mulf %111, %130 : vector<8x32xf32>
    %134 = arith.mulf %113, %131 : vector<8x32xf32>
    %135 = arith.addf %133, %134 : vector<8x32xf32>
    %136 = arith.mulf %115, %132 : vector<8x32xf32>
    %137 = arith.addf %135, %136 : vector<8x32xf32>
    %138 = arith.mulf %130, %130 : vector<8x32xf32>
    %139 = arith.mulf %131, %131 : vector<8x32xf32>
    %140 = arith.addf %138, %139 : vector<8x32xf32>
    %141 = arith.mulf %132, %132 : vector<8x32xf32>
    %142 = arith.addf %140, %141 : vector<8x32xf32>
    %cst_58 = arith.constant 9.99999997E-7 : f32
    %143 = vector.broadcast %cst_58 : f32 to vector<8x32xf32>
    %144 = arith.addf %142, %143 : vector<8x32xf32>
    %cst_59 = arith.constant 0.000000e+00 : f32
    %145 = vector.broadcast %cst_59 : f32 to vector<8x32xf32>
    %146 = arith.cmpf oge, %137, %145 : vector<8x32xf32>
    %147 = arith.divf %137, %144 : vector<8x32xf32>
    %cst_60 = arith.constant 0.000000e+00 : f32
    %148 = vector.broadcast %cst_60 : f32 to vector<8x32xf32>
    %149 = arith.select %146, %148, %147 : vector<8x32xi1>, vector<8x32xf32>
    %cst_61 = arith.constant 2.000000e-01 : f32
    %150 = vector.broadcast %cst_61 : f32 to vector<8x32xf32>
    %151 = arith.mulf %150, %111 : vector<8x32xf32>
    %152 = arith.mulf %149, %130 : vector<8x32xf32>
    %153 = arith.subf %111, %152 : vector<8x32xf32>
    %cst_62 = arith.constant 8.000000e-01 : f32
    %154 = vector.broadcast %cst_62 : f32 to vector<8x32xf32>
    %155 = arith.mulf %154, %153 : vector<8x32xf32>
    %156 = arith.addf %151, %155 : vector<8x32xf32>
    %cst_63 = arith.constant 2.000000e-01 : f32
    %157 = vector.broadcast %cst_63 : f32 to vector<8x32xf32>
    %158 = arith.mulf %157, %113 : vector<8x32xf32>
    %159 = arith.mulf %149, %131 : vector<8x32xf32>
    %160 = arith.subf %113, %159 : vector<8x32xf32>
    %cst_64 = arith.constant 8.000000e-01 : f32
    %161 = vector.broadcast %cst_64 : f32 to vector<8x32xf32>
    %162 = arith.mulf %161, %160 : vector<8x32xf32>
    %163 = arith.addf %158, %162 : vector<8x32xf32>
    %cst_65 = arith.constant 2.000000e-01 : f32
    %164 = vector.broadcast %cst_65 : f32 to vector<8x32xf32>
    %165 = arith.mulf %164, %115 : vector<8x32xf32>
    %166 = arith.mulf %149, %132 : vector<8x32xf32>
    %167 = arith.subf %115, %166 : vector<8x32xf32>
    %cst_66 = arith.constant 8.000000e-01 : f32
    %168 = vector.broadcast %cst_66 : f32 to vector<8x32xf32>
    %169 = arith.mulf %168, %167 : vector<8x32xf32>
    %170 = arith.addf %165, %169 : vector<8x32xf32>
    %cst_67 = arith.constant 0.000000e+00 : f32
    %171 = vector.broadcast %cst_67 : f32 to vector<8x32xf32>
    %172 = arith.cmpf oge, %127, %171 : vector<8x32xf32>
    %cst_68 = arith.constant 2.000000e-01 : f32
    %173 = vector.broadcast %cst_68 : f32 to vector<8x32xf32>
    %174 = arith.mulf %173, %127 : vector<8x32xf32>
    %175 = arith.select %172, %127, %174 : vector<8x32xi1>, vector<8x32xf32>
    %176 = arith.addf %156, %92 : vector<8x32xf32>
    %177 = arith.addf %163, %93 : vector<8x32xf32>
    %178 = arith.addf %170, %94 : vector<8x32xf32>
    %179 = arith.addf %175, %95 : vector<8x32xf32>
    %c0_69 = arith.constant 0 : index
    %c0_70 = arith.constant 0 : index
    %180 = vector.load %arg8[%c0_69, %c0_70] : memref<32x48xf32, #tpu.memory_space<vmem>>, vector<32x48xf32>
    %c0_71 = arith.constant 0 : index
    %c0_72 = arith.constant 0 : index
    %181 = vector.load %arg9[%c0_71, %c0_72] : memref<32x32xf32, #tpu.memory_space<vmem>>, vector<32x32xf32>
    %c0_73 = arith.constant 0 : index
    %c0_74 = arith.constant 0 : index
    %182 = vector.load %arg10[%c0_73, %c0_74] : memref<1x32xf32, #tpu.memory_space<vmem>>, vector<1x32xf32>
    %cst_75 = arith.constant dense<0.000000e+00> : vector<8x32xf32>
    %183 = tpu.matmul %179, %181, %cst_75 {dimension_numbers = #tpu.dot_dimension_numbers<[1], [0], [0], [1], [0, 0, 1, 1], [], []>} : vector<8x32xf32>, vector<32x32xf32>, vector<8x32xf32> -> vector<8x32xf32>
    %184 = vector.broadcast %182 : vector<1x32xf32> to vector<8x32xf32>
    %185 = arith.addf %183, %184 : vector<8x32xf32>
    %186 = vector.extract_strided_slice %185 {offsets = [0, 0], sizes = [8, 16], strides = [1, 1]} : vector<8x32xf32> to vector<8x16xf32>
    %187 = vector.extract_strided_slice %185 {offsets = [0, 16], sizes = [8, 16], strides = [1, 1]} : vector<8x32xf32> to vector<8x16xf32>
    %cst_76 = arith.constant dense<0.000000e+00> : vector<8x48xf32>
    %188 = tpu.matmul %176, %180, %cst_76 {dimension_numbers = #tpu.dot_dimension_numbers<[1], [0], [0], [1], [0, 0, 1, 1], [], []>} : vector<8x32xf32>, vector<32x48xf32>, vector<8x48xf32> -> vector<8x48xf32>
    %cst_77 = arith.constant dense<0.000000e+00> : vector<8x48xf32>
    %189 = tpu.matmul %177, %180, %cst_77 {dimension_numbers = #tpu.dot_dimension_numbers<[1], [0], [0], [1], [0, 0, 1, 1], [], []>} : vector<8x32xf32>, vector<32x48xf32>, vector<8x48xf32> -> vector<8x48xf32>
    %cst_78 = arith.constant dense<0.000000e+00> : vector<8x48xf32>
    %190 = tpu.matmul %178, %180, %cst_78 {dimension_numbers = #tpu.dot_dimension_numbers<[1], [0], [0], [1], [0, 0, 1, 1], [], []>} : vector<8x32xf32>, vector<32x48xf32>, vector<8x48xf32> -> vector<8x48xf32>
    %191 = vector.extract_strided_slice %188 {offsets = [0, 0], sizes = [8, 16], strides = [1, 1]} : vector<8x48xf32> to vector<8x16xf32>
    %192 = arith.mulf %191, %186 : vector<8x16xf32>
    %193 = vector.extract_strided_slice %189 {offsets = [0, 0], sizes = [8, 16], strides = [1, 1]} : vector<8x48xf32> to vector<8x16xf32>
    %194 = arith.mulf %193, %186 : vector<8x16xf32>
    %195 = vector.extract_strided_slice %190 {offsets = [0, 0], sizes = [8, 16], strides = [1, 1]} : vector<8x48xf32> to vector<8x16xf32>
    %196 = arith.mulf %195, %186 : vector<8x16xf32>
    %197 = vector.extract_strided_slice %188 {offsets = [0, 16], sizes = [8, 16], strides = [1, 1]} : vector<8x48xf32> to vector<8x16xf32>
    %198 = vector.extract_strided_slice %188 {offsets = [0, 32], sizes = [8, 16], strides = [1, 1]} : vector<8x48xf32> to vector<8x16xf32>
    %199 = arith.mulf %197, %198 : vector<8x16xf32>
    %200 = vector.extract_strided_slice %189 {offsets = [0, 16], sizes = [8, 16], strides = [1, 1]} : vector<8x48xf32> to vector<8x16xf32>
    %201 = vector.extract_strided_slice %189 {offsets = [0, 32], sizes = [8, 16], strides = [1, 1]} : vector<8x48xf32> to vector<8x16xf32>
    %202 = arith.mulf %200, %201 : vector<8x16xf32>
    %203 = arith.addf %199, %202 : vector<8x16xf32>
    %204 = vector.extract_strided_slice %190 {offsets = [0, 16], sizes = [8, 16], strides = [1, 1]} : vector<8x48xf32> to vector<8x16xf32>
    %205 = vector.extract_strided_slice %190 {offsets = [0, 32], sizes = [8, 16], strides = [1, 1]} : vector<8x48xf32> to vector<8x16xf32>
    %206 = arith.mulf %204, %205 : vector<8x16xf32>
    %207 = arith.addf %203, %206 : vector<8x16xf32>
    %208 = arith.addf %207, %187 : vector<8x16xf32>
    %209 = tpu.concatenate %192, %194, %196, %208 in 1 : vector<8x16xf32>, vector<8x16xf32>, vector<8x16xf32>, vector<8x16xf32> -> vector<8x64xf32>
    %c0_79 = arith.constant 0 : index
    %c0_80 = arith.constant 0 : index
    %210 = vector.load %arg11[%c0_79, %c0_80] : memref<8x64xf32, #tpu.memory_space<vmem>>, vector<8x64xf32>
    tpu.vector_store %arg11[%c0_79, %c0_80], %209 {strides = array<i32>} : memref<8x64xf32, #tpu.memory_space<vmem>>, vector<8x64xf32>,
    return
  }
  func.func @transform_0(%arg0: i32) -> (i32, i32, i32) {
    %c0_i32 = arith.constant 0 : i32
    %c0_i32_0 = arith.constant 0 : i32
    %c0_i32_1 = arith.constant 0 : i32
    return %c0_i32, %arg0, %c0_i32_0 : i32, i32, i32
  }
  func.func @transform_1(%arg0: i32) -> (i32, i32) {
    %c0_i32 = arith.constant 0 : i32
    %c0_i32_0 = arith.constant 0 : i32
    return %arg0, %c0_i32 : i32, i32
  }
  func.func @transform_2(%arg0: i32) -> (i32, i32) {
    %c0_i32 = arith.constant 0 : i32
    %c0_i32_0 = arith.constant 0 : i32
    return %arg0, %c0_i32 : i32, i32
  }
  func.func @transform_3(%arg0: i32) -> (i32, i32, i32) {
    %c0_i32 = arith.constant 0 : i32
    %c0_i32_0 = arith.constant 0 : i32
    %c0_i32_1 = arith.constant 0 : i32
    %c0_i32_2 = arith.constant 0 : i32
    return %c0_i32, %c0_i32_0, %c0_i32_1 : i32, i32, i32
  }
  func.func @transform_4(%arg0: i32) -> (i32, i32, i32) {
    %c0_i32 = arith.constant 0 : i32
    %c0_i32_0 = arith.constant 0 : i32
    %c0_i32_1 = arith.constant 0 : i32
    %c0_i32_2 = arith.constant 0 : i32
    return %c0_i32, %c0_i32_0, %c0_i32_1 : i32, i32, i32
  }
  func.func @transform_5(%arg0: i32) -> (i32, i32, i32) {
    %c0_i32 = arith.constant 0 : i32
    %c0_i32_0 = arith.constant 0 : i32
    %c0_i32_1 = arith.constant 0 : i32
    %c0_i32_2 = arith.constant 0 : i32
    return %c0_i32, %c0_i32_0, %c0_i32_1 : i32, i32, i32
  }
  func.func @transform_6(%arg0: i32) -> (i32, i32, i32) {
    %c0_i32 = arith.constant 0 : i32
    %c0_i32_0 = arith.constant 0 : i32
    %c0_i32_1 = arith.constant 0 : i32
    %c0_i32_2 = arith.constant 0 : i32
    return %c0_i32, %c0_i32_0, %c0_i32_1 : i32, i32, i32
  }
  func.func @transform_7(%arg0: i32) -> (i32, i32) {
    %c0_i32 = arith.constant 0 : i32
    %c0_i32_0 = arith.constant 0 : i32
    %c0_i32_1 = arith.constant 0 : i32
    return %c0_i32, %c0_i32_0 : i32, i32
  }
  func.func @transform_8(%arg0: i32) -> (i32, i32) {
    %c0_i32 = arith.constant 0 : i32
    %c0_i32_0 = arith.constant 0 : i32
    %c0_i32_1 = arith.constant 0 : i32
    return %c0_i32, %c0_i32_0 : i32, i32
  }
  func.func @transform_9(%arg0: i32) -> (i32, i32) {
    %c0_i32 = arith.constant 0 : i32
    %c0_i32_0 = arith.constant 0 : i32
    %c0_i32_1 = arith.constant 0 : i32
    return %c0_i32, %c0_i32_0 : i32, i32
  }
  func.func @transform_10(%arg0: i32) -> (i32, i32) {
    %c0_i32 = arith.constant 0 : i32
    %c0_i32_0 = arith.constant 0 : i32
    return %arg0, %c0_i32 : i32, i32
  }
}

</mosaic_0001>

<llo_original>
// kernel: latent_diffusion_forward.1
$region0: #{latent_diffusion_forward.1}
  #allocation0 [shape = 'u32[]', space=smem, size = 0x4, offset = 0x4, fixed_abs, tag = 'smem constant byte address 0x4 - core index']
  #allocation1 [shape = 'u32[72,128]{1,0:T(1,128)}', space=vmem, size = 0x9000, scoped, tag = 'internal scratch']
  %s0 = inlined_call_operand.vmem [shape: f32[3,8,16], index: 0, kind: input, shape index: {}]
  %s1 = inlined_call_operand.vmem [shape: f32[8,16], index: 1, kind: input, shape index: {}]
  %s2 = inlined_call_operand.vmem [shape: f32[8,16], index: 2, kind: input, shape index: {}]
  %s3 = inlined_call_operand.vmem [shape: f32[2,32,96], index: 3, kind: input, shape index: {}]
  %s4 = inlined_call_operand.hbm [shape: f32[2,32,64], index: 4, kind: input, shape index: {}]
  %s5 = inlined_call_operand.hbm [shape: f32[2,32,32], index: 5, kind: input, shape index: {}]
  %s6 = inlined_call_operand.vmem [shape: f32[2,1,64], index: 6, kind: input, shape index: {}]
  %s7 = inlined_call_operand.hbm [shape: f32[32,48], index: 7, kind: input, shape index: {}]
  %s8 = inlined_call_operand.hbm [shape: f32[32,32], index: 8, kind: input, shape index: {}]
  %s9 = inlined_call_operand.vmem [shape: f32[1,32], index: 9, kind: input, shape index: {}]
  %s10 = inlined_call_operand.vmem [shape: f32[8,64], index: 10, kind: output, shape index: {}]
  %s11 = sld [smem:[#allocation0]]
  $region66: #{latent_diffusion_forward.1} parent=0
    _
  %s13 = ssub.s32 1, %s11
  %s14 = scalar_select 0, %s13, %s11
  $region1: #{latent_diffusion_forward.1} parent=0
    #allocation2 [shape = 'u8[32768]{0}', space=vmem, size = 0x8000, scoped, tag = 'input window, operand 4, single buffered']
    #allocation3 [shape = 's32[1]{0}', space=sflag, size = 0x4, scoped, tag = 'scoped memory for latent_diffusion_forward.1']
    #allocation4 [shape = 'u8[32768]{0}', space=vmem, size = 0x8000, scoped, tag = 'input window, operand 5, single buffered']
    #allocation5 [shape = 's32[1]{0}', space=sflag, size = 0x4, scoped, tag = 'scoped memory for latent_diffusion_forward.1']
    #allocation6 [shape = 'u8[16384]{0}', space=vmem, size = 0x4000, scoped, tag = 'input window, operand 7, single buffered']
    #allocation7 [shape = 'u8[16384]{0}', space=vmem, size = 0x4000, scoped, tag = 'input window, operand 8, single buffered']
    #allocation8 [shape = 's32[1]{0}', space=sflag, size = 0x4, scoped, tag = 'scoped memory for latent_diffusion_forward.1']
    %15 = vsyncpa [#allocation3], 0
    %16 = vsyncpa [#allocation5], 0
    %17 = vsyncpa [#allocation8], 0
    // Predicated region
    $region2: #{latent_diffusion_forward.1} parent=1 // pred_check
      _
    $region3: #{latent_diffusion_forward.1} parent=1 // pred_check_branch
      %19 = sbr.rel (0) target = $region5
    $region4: #{latent_diffusion_forward.1} parent=1 // pred_region
      _
    $region5: #{latent_diffusion_forward.1} parent=1 // pred_fallthru
      _
    // Predicated region
    $region6: #{latent_diffusion_forward.1} parent=1 // pred_check
      _
    $region7: #{latent_diffusion_forward.1} parent=1 // pred_check_branch
      %21 = sbr.rel (0) target = $region9
    $region8: #{latent_diffusion_forward.1} parent=1 // pred_region
      _
    $region9: #{latent_diffusion_forward.1} parent=1 // pred_fallthru
      _
    // Predicated region
    $region10: #{latent_diffusion_forward.1} parent=1 // pred_check
      _
    $region11: #{latent_diffusion_forward.1} parent=1 // pred_check_branch
      %23 = sbr.rel (0) target = $region13
    $region12: #{latent_diffusion_forward.1} parent=1 // pred_region
      _
    $region13: #{latent_diffusion_forward.1} parent=1 // pred_fallthru
      _
    // Predicated region
    $region14: #{latent_diffusion_forward.1} parent=1 // pred_check
      _
    $region15: #{latent_diffusion_forward.1} parent=1 // pred_check_branch
      %25 = sbr.rel (0) target = $region17
    $region16: #{latent_diffusion_forward.1} parent=1 // pred_region
      _
    $region17: #{latent_diffusion_forward.1} parent=1 // pred_fallthru
      _
    // Predicated region
    $region18: #{latent_diffusion_forward.1} parent=1 // pred_check
      _
    $region19: #{latent_diffusion_forward.1} parent=1 // pred_check_branch
      %27 = sbr.rel (0) target = $region21
    $region20: #{latent_diffusion_forward.1} parent=1 // pred_region
      %29 = vsyncadd [#allocation3], 0
      %s30 = sshll.u32 %s4, 4
      %s31 = int_to_ptr.hbm [resolvable:$true] %s30
      %s32 = sshll.u32 [#allocation2], 4
      %s33 = int_to_ptr.vmem [resolvable:$true] %s32
      %38 = dma.hbm_to_vmem [thread:$0]  %s31, 1024, %s33, [#allocation3], 128, 128, 8
    $region21: #{latent_diffusion_forward.1} parent=1 // pred_fallthru
      _
    // Predicated region
    $region22: #{latent_diffusion_forward.1} parent=1 // pred_check
      _
    $region23: #{latent_diffusion_forward.1} parent=1 // pred_check_branch
      %40 = sbr.rel (0) target = $region25
    $region24: #{latent_diffusion_forward.1} parent=1 // pred_region
      %42 = vsyncadd [#allocation5], 0
      %s43 = sshll.u32 %s5, 4
      %s44 = int_to_ptr.hbm [resolvable:$true] %s43
      %s45 = sshll.u32 [#allocation4], 4
      %s46 = int_to_ptr.vmem [resolvable:$true] %s45
      %51 = dma.hbm_to_vmem [thread:$0]  %s44, 1024, %s46, [#allocation5], 128, 128, 8
    $region25: #{latent_diffusion_forward.1} parent=1 // pred_fallthru
      _
    // Predicated region
    $region26: #{latent_diffusion_forward.1} parent=1 // pred_check
      _
    $region27: #{latent_diffusion_forward.1} parent=1 // pred_check_branch
      %53 = sbr.rel (0) target = $region29
    $region28: #{latent_diffusion_forward.1} parent=1 // pred_region
      _
    $region29: #{latent_diffusion_forward.1} parent=1 // pred_fallthru
      _
    // Predicated region
    $region30: #{latent_diffusion_forward.1} parent=1 // pred_check
      _
    $region31: #{latent_diffusion_forward.1} parent=1 // pred_check_branch
      %55 = sbr.rel (0) target = $region33
    $region32: #{latent_diffusion_forward.1} parent=1 // pred_region
      %57 = vsyncadd [#allocation5], 0
      %s58 = sshll.u32 %s7, 4
      %s59 = int_to_ptr.hbm [resolvable:$true] %s58
      %s60 = sshll.u32 [#allocation6], 4
      %s61 = int_to_ptr.vmem [resolvable:$true] %s60
      %66 = dma.hbm_to_vmem [thread:$0]  %s59, 512, %s61, [#allocation5], 128, 128, 8
    $region33: #{latent_diffusion_forward.1} parent=1 // pred_fallthru
      _
    // Predicated region
    $region34: #{latent_diffusion_forward.1} parent=1 // pred_check
      _
    $region35: #{latent_diffusion_forward.1} parent=1 // pred_check_branch
      %68 = sbr.rel (0) target = $region37
    $region36: #{latent_diffusion_forward.1} parent=1 // pred_region
      %70 = vsyncadd [#allocation8], 0
      %s71 = sshll.u32 %s8, 4
      %s72 = int_to_ptr.hbm [resolvable:$true] %s71
      %s73 = sshll.u32 [#allocation7], 4
      %s74 = int_to_ptr.vmem [resolvable:$true] %s73
      %79 = dma.hbm_to_vmem [thread:$0]  %s72, 512, %s74, [#allocation8], 128, 128, 8
    $region37: #{latent_diffusion_forward.1} parent=1 // pred_fallthru
      _
    // Predicated region
    $region38: #{latent_diffusion_forward.1} parent=1 // pred_check
      _
    $region39: #{latent_diffusion_forward.1} parent=1 // pred_check_branch
      %81 = sbr.rel (0) target = $region41
    $region40: #{latent_diffusion_forward.1} parent=1 // pred_region
      _
    $region41: #{latent_diffusion_forward.1} parent=1 // pred_fallthru
      _
    // Predicated region
    $region42: #{latent_diffusion_forward.1} parent=1 // pred_check
      _
    $region43: #{latent_diffusion_forward.1} parent=1 // pred_check_branch
      %83 = sbr.rel (0) target = $region45
    $region44: #{latent_diffusion_forward.1} parent=1 // pred_region
      %85 = dma.done [#allocation3], 1024
    $region45: #{latent_diffusion_forward.1} parent=1 // pred_fallthru
      _
    // Predicated region
    $region46: #{latent_diffusion_forward.1} parent=1 // pred_check
      _
    $region47: #{latent_diffusion_forward.1} parent=1 // pred_check_branch
      %87 = sbr.rel (0) target = $region49
    $region48: #{latent_diffusion_forward.1} parent=1 // pred_region
      %89 = dma.done [#allocation5], 1024
    $region49: #{latent_diffusion_forward.1} parent=1 // pred_fallthru
      _
    // Predicated region
    $region50: #{latent_diffusion_forward.1} parent=1 // pred_check
      _
    $region51: #{latent_diffusion_forward.1} parent=1 // pred_check_branch
      %91 = sbr.rel (0) target = $region53
    $region52: #{latent_diffusion_forward.1} parent=1 // pred_region
      %93 = dma.done [#allocation5], 512
    $region53: #{latent_diffusion_forward.1} parent=1 // pred_fallthru
      _
    // Predicated region
    $region54: #{latent_diffusion_forward.1} parent=1 // pred_check
      _
    $region55: #{latent_diffusion_forward.1} parent=1 // pred_check_branch
      %95 = sbr.rel (0) target = $region57
    $region56: #{latent_diffusion_forward.1} parent=1 // pred_region
      %97 = dma.done [#allocation8], 512
    $region57: #{latent_diffusion_forward.1} parent=1 // pred_fallthru
      _
    %v98 = vld [vmem:[%s2] sm:$0xff]
    %v99 = vld [vmem:[%s1] sm:$0xff]
    %101 = vrot.lane.b32.xlu0 %v98, 16
    %v102 = vpop.permute.xlu0 %101
    %vm104 = vcmask 130048
    %v105 = vsel %vm104, %v99, %v102
    %v106 = vld [vmem:[%s0] sm:$0xff]
    %v107 = vsel %vm104, %v106, %v102
    %s108 = scalar_lea.vmem %s0, 8
    %v109 = vld [vmem:[%s108] sm:$0xff]
    %v110 = vsel %vm104, %v109, %v102
    %s111 = scalar_lea.vmem %s0, 16
    %v112 = vld [vmem:[%s111] sm:$0xff]
    %v113 = vsel %vm104, %v112, %v102
    %v114 = vld [vmem:[%s3] sm:$0xff]
    %v115 = vld [vmem:[%s3 + $0x8] sm:$0xff]
    %v116 = vld [vmem:[%s3 + $0x10] sm:$0xff]
    %v117 = vld [vmem:[%s3 + $0x18] sm:$0xff]
    %v118 = vld [vmem:[#allocation2] sm:$0xff]
    %v119 = vld [vmem:[#allocation2 + $0x8] sm:$0xff]
    %v120 = vld [vmem:[#allocation2 + $0x10] sm:$0xff]
    %v121 = vld [vmem:[#allocation2 + $0x18] sm:$0xff]
    %v122 = vld [vmem:[%s6] sm:$0x1]
    %v124 = vperm.slane %v122, 0
    %vm126 = vcmask 261120
    %v128 = vsel %vm126, %v105, 0
    %130 = vmatpush.msra.mxu0 0.0
    %131 = vmatpush.msra.mxu0 0.0
    %132 = vmatpush.msra.mxu0 0.0
    %133 = vmatpush.msra.mxu0 0.0
    %134 = vmatpush.msra.mxu0 0.0
    %135 = vmatpush.msra.mxu0 0.0
    %136 = vmatpush.msra.mxu0 0.0
    %137 = vmatpush.msra.mxu0 0.0
    %138 = vmatpush.msra.mxu0 0.0
    %139 = vmatpush.msra.mxu0 0.0
    %140 = vmatpush.msra.mxu0 0.0
    %141 = vmatpush.msra.mxu0 0.0
    %142 = vmatpush.msra.mxu0 %v121
    %143 = vmatpush.msra.mxu0 %v120
    %144 = vmatpush.msra.mxu0 %v119
    %145 = vmatpush.msra.mxu0 %v118
    %146 = vmatmul.f32.gmra.mxu0 %v128
    %v147 = vpop.f32.mrf.mxu0
    %v148 = vadd.f32 %v124, %v147
    %149 = vdwg.mxu0
    %v151 = vsel %vm126, %v107, 0
    %153 = vmatpush.msra.mxu0 0.0
    %154 = vmatpush.msra.mxu0 0.0
    %155 = vmatpush.msra.mxu0 0.0
    %156 = vmatpush.msra.mxu0 0.0
    %157 = vmatpush.msra.mxu0 0.0
    %158 = vmatpush.msra.mxu0 0.0
    %159 = vmatpush.msra.mxu0 0.0
    %160 = vmatpush.msra.mxu0 0.0
    %161 = vmatpush.msra.mxu0 0.0
    %162 = vmatpush.msra.mxu0 0.0
    %163 = vmatpush.msra.mxu0 0.0
    %164 = vmatpush.msra.mxu0 0.0
    %165 = vmatpush.msra.mxu0 %v117
    %166 = vmatpush.msra.mxu0 %v116
    %167 = vmatpush.msra.mxu0 %v115
    %168 = vmatpush.msra.mxu0 %v114
    %169 = vmatmul.f32.gmra.mxu0 %v151
    %v170 = vpop.f32.mrf.mxu0
    %v171 = vadd.f32 0.0, %v170
    %172 = vdwg.mxu0
    %v174 = vsel %vm126, %v110, 0
    %176 = vmatpush.msra.mxu0 0.0
    %177 = vmatpush.msra.mxu0 0.0
    %178 = vmatpush.msra.mxu0 0.0
    %179 = vmatpush.msra.mxu0 0.0
    %180 = vmatpush.msra.mxu0 0.0
    %181 = vmatpush.msra.mxu0 0.0
    %182 = vmatpush.msra.mxu0 0.0
    %183 = vmatpush.msra.mxu0 0.0
    %184 = vmatpush.msra.mxu0 0.0
    %185 = vmatpush.msra.mxu0 0.0
    %186 = vmatpush.msra.mxu0 0.0
    %187 = vmatpush.msra.mxu0 0.0
    %188 = vmatpush.msra.mxu0 %v117
    %189 = vmatpush.msra.mxu0 %v116
    %190 = vmatpush.msra.mxu0 %v115
    %191 = vmatpush.msra.mxu0 %v114
    %192 = vmatmul.f32.gmra.mxu0 %v174
    %v193 = vpop.f32.mrf.mxu0
    %v194 = vadd.f32 0.0, %v193
    %195 = vdwg.mxu0
    %v197 = vsel %vm126, %v113, 0
    %199 = vmatpush.msra.mxu0 0.0
    %200 = vmatpush.msra.mxu0 0.0
    %201 = vmatpush.msra.mxu0 0.0
    %202 = vmatpush.msra.mxu0 0.0
    %203 = vmatpush.msra.mxu0 0.0
    %204 = vmatpush.msra.mxu0 0.0
    %205 = vmatpush.msra.mxu0 0.0
    %206 = vmatpush.msra.mxu0 0.0
    %207 = vmatpush.msra.mxu0 0.0
    %208 = vmatpush.msra.mxu0 0.0
    %209 = vmatpush.msra.mxu0 0.0
    %210 = vmatpush.msra.mxu0 0.0
    %211 = vmatpush.msra.mxu0 %v117
    %212 = vmatpush.msra.mxu0 %v116
    %213 = vmatpush.msra.mxu0 %v115
    %214 = vmatpush.msra.mxu0 %v114
    %215 = vmatmul.f32.gmra.mxu0 %v197
    %v216 = vpop.f32.mrf.mxu0
    %v217 = vadd.f32 0.0, %v216
    %218 = vdwg.mxu0
    %v219 = vmul.f32 %v171, %v148
    %v220 = vmul.f32 %v194, %v148
    %v221 = vmul.f32 %v217, %v148
    %223 = vrot.lane.b32.xlu0 %v171, 96
    %v224 = vpop.permute.xlu0 %223
    %v226 = vmul.f32 %v171, %v224
    %228 = vrot.lane.b32.xlu0 %v194, 96
    %v229 = vpop.permute.xlu0 %228
    %v231 = vmul.f32 %v194, %v229
    %v232 = vadd.f32 %v226, %v231
    %234 = vrot.lane.b32.xlu0 %v217, 96
    %v235 = vpop.permute.xlu0 %234
    %v237 = vmul.f32 %v217, %v235
    %v238 = vadd.f32 %v232, %v237
    %v239 = vadd.f32 %v238, %v148
    %v240 = vld [vmem:[#allocation4] sm:$0xff]
    %v241 = vld [vmem:[#allocation4 + $0x8] sm:$0xff]
    %v242 = vld [vmem:[#allocation4 + $0x10] sm:$0xff]
    %v243 = vld [vmem:[#allocation4 + $0x18] sm:$0xff]
    %v245 = vsel %vm126, %v219, 0
    %247 = vmatpush.msra.mxu0 0.0
    %248 = vmatpush.msra.mxu0 0.0
    %249 = vmatpush.msra.mxu0 0.0
    %250 = vmatpush.msra.mxu0 0.0
    %251 = vmatpush.msra.mxu0 0.0
    %252 = vmatpush.msra.mxu0 0.0
    %253 = vmatpush.msra.mxu0 0.0
    %254 = vmatpush.msra.mxu0 0.0
    %255 = vmatpush.msra.mxu0 0.0
    %256 = vmatpush.msra.mxu0 0.0
    %257 = vmatpush.msra.mxu0 0.0
    %258 = vmatpush.msra.mxu0 0.0
    %259 = vmatpush.msra.mxu0 %v243
    %260 = vmatpush.msra.mxu0 %v242
    %261 = vmatpush.msra.mxu0 %v241
    %262 = vmatpush.msra.mxu0 %v240
    %263 = vmatmul.f32.gmra.mxu0 %v245
    %v264 = vpop.f32.mrf.mxu0
    %v265 = vadd.f32 0.0, %v264
    %266 = vdwg.mxu0
    %v268 = vsel %vm126, %v220, 0
    %270 = vmatpush.msra.mxu0 0.0
    %271 = vmatpush.msra.mxu0 0.0
    %272 = vmatpush.msra.mxu0 0.0
    %273 = vmatpush.msra.mxu0 0.0
    %274 = vmatpush.msra.mxu0 0.0
    %275 = vmatpush.msra.mxu0 0.0
    %276 = vmatpush.msra.mxu0 0.0
    %277 = vmatpush.msra.mxu0 0.0
    %278 = vmatpush.msra.mxu0 0.0
    %279 = vmatpush.msra.mxu0 0.0
    %280 = vmatpush.msra.mxu0 0.0
    %281 = vmatpush.msra.mxu0 0.0
    %282 = vmatpush.msra.mxu0 %v243
    %283 = vmatpush.msra.mxu0 %v242
    %284 = vmatpush.msra.mxu0 %v241
    %285 = vmatpush.msra.mxu0 %v240
    %286 = vmatmul.f32.gmra.mxu0 %v268
    %v287 = vpop.f32.mrf.mxu0
    %v288 = vadd.f32 0.0, %v287
    %289 = vdwg.mxu0
    %v291 = vsel %vm126, %v221, 0
    %293 = vmatpush.msra.mxu0 0.0
    %294 = vmatpush.msra.mxu0 0.0
    %295 = vmatpush.msra.mxu0 0.0
    %296 = vmatpush.msra.mxu0 0.0
    %297 = vmatpush.msra.mxu0 0.0
    %298 = vmatpush.msra.mxu0 0.0
    %299 = vmatpush.msra.mxu0 0.0
    %300 = vmatpush.msra.mxu0 0.0
    %301 = vmatpush.msra.mxu0 0.0
    %302 = vmatpush.msra.mxu0 0.0
    %303 = vmatpush.msra.mxu0 0.0
    %304 = vmatpush.msra.mxu0 0.0
    %305 = vmatpush.msra.mxu0 %v243
    %306 = vmatpush.msra.mxu0 %v242
    %307 = vmatpush.msra.mxu0 %v241
    %308 = vmatpush.msra.mxu0 %v240
    %309 = vmatmul.f32.gmra.mxu0 %v291
    %v310 = vpop.f32.mrf.mxu0
    %v311 = vadd.f32 0.0, %v310
    %312 = vdwg.mxu0
    %v313 = vmul.f32 %v219, %v265
    %v314 = vmul.f32 %v220, %v288
    %v315 = vadd.f32 %v313, %v314
    %v316 = vmul.f32 %v221, %v311
    %v317 = vadd.f32 %v315, %v316
    %v318 = vmul.f32 %v265, %v265
    %v319 = vmul.f32 %v288, %v288
    %v320 = vadd.f32 %v318, %v319
    %v321 = vmul.f32 %v311, %v311
    %v322 = vadd.f32 %v320, %v321
    %v323 = vadd.f32 %v322, 1e-06
    %vm324 = vcmp.ge.f32.partialorder %v317, 0.0
    %v325 = vrcp.pop %v323
    %v326 = vmul.f32 %v323, %v325
    %v327 = vsub.f32 1.0, %v326
    %v328 = vmul.f32 %v325, %v327
    %v329 = vadd.f32 %v325, %v328
    %vm330 = vweird.f32 %v323
    %vm331 = vweird.f32 %v325
    %vm332 = vmor %vm330, %vm331
    %v333 = vsel %vm332, %v325, %v329
    %v334 = vand.u32 2147483647, %v323
    %vm335 = vcmp.eq.f32.partialorder %v334, 8.507059e+37
    %v336 = vand.u32 %v323, 2147483648
    %v337 = vor.u32 1.1754944e-38, %v336
    %v338 = vsel %vm335, %v337, %v333
    %v339 = vmul.f32 %v317, %v338
    %v340 = vsel %vm324, 0.0, %v339
    %v341 = vmul.f32 %v219, 0.2
    %v342 = vmul.f32 %v340, %v265
    %v343 = vsub.f32 %v219, %v342
    %v344 = vmul.f32 %v343, 0.8
    %v345 = vadd.f32 %v341, %v344
    %v346 = vmul.f32 %v220, 0.2
    %v347 = vmul.f32 %v340, %v288
    %v348 = vsub.f32 %v220, %v347
    %v349 = vmul.f32 %v348, 0.8
    %v350 = vadd.f32 %v346, %v349
    %v351 = vmul.f32 %v221, 0.2
    %v352 = vmul.f32 %v340, %v311
    %v353 = vsub.f32 %v221, %v352
    %v354 = vmul.f32 %v353, 0.8
    %v355 = vadd.f32 %v351, %v354
    %vm356 = vcmp.ge.f32.partialorder %v239, 0.0
    %v357 = vmul.f32 %v239, 0.2
    %v358 = vsel %vm356, %v239, %v357
    %v359 = vadd.f32 %v345, %v107
    %v360 = vadd.f32 %v350, %v110
    %v361 = vadd.f32 %v355, %v113
    %362 = vrot.lane.b32.xlu0 %v105, 32
    %v363 = vpop.permute.xlu0 %362
    %v365 = vadd.f32 %v358, %v363
    %s366 = scalar_lea.vmem %s3, 32
    %v367 = vld [vmem:[%s366] sm:$0xff]
    %v368 = vld [vmem:[%s366 + $0x8] sm:$0xff]
    %v369 = vld [vmem:[%s366 + $0x10] sm:$0xff]
    %v370 = vld [vmem:[%s366 + $0x18] sm:$0xff]
    %s371 = scalar_lea.vmem [#allocation2], 32
    %v372 = vld [vmem:[%s371] sm:$0xff]
    %v373 = vld [vmem:[%s371 + $0x8] sm:$0xff]
    %v374 = vld [vmem:[%s371 + $0x10] sm:$0xff]
    %v375 = vld [vmem:[%s371 + $0x18] sm:$0xff]
    %s376 = scalar_lea.vmem %s6, 1
    %v377 = vld [vmem:[%s376] sm:$0x1]
    %v379 = vperm.slane %v377, 0
    %382 = vrot.lane.b32.xlu0 %v365, 96
    %v383 = vpop.permute.xlu0 %382
    %v384 = vsel %vm126, %v383, 0
    %386 = vmatpush.msra.mxu0 0.0
    %387 = vmatpush.msra.mxu0 0.0
    %388 = vmatpush.msra.mxu0 0.0
    %389 = vmatpush.msra.mxu0 0.0
    %390 = vmatpush.msra.mxu0 0.0
    %391 = vmatpush.msra.mxu0 0.0
    %392 = vmatpush.msra.mxu0 0.0
    %393 = vmatpush.msra.mxu0 0.0
    %394 = vmatpush.msra.mxu0 0.0
    %395 = vmatpush.msra.mxu0 0.0
    %396 = vmatpush.msra.mxu0 0.0
    %397 = vmatpush.msra.mxu0 0.0
    %398 = vmatpush.msra.mxu0 %v375
    %399 = vmatpush.msra.mxu0 %v374
    %400 = vmatpush.msra.mxu0 %v373
    %401 = vmatpush.msra.mxu0 %v372
    %402 = vmatmul.f32.gmra.mxu0 %v384
    %v403 = vpop.f32.mrf.mxu0
    %v404 = vadd.f32 %v379, %v403
    %405 = vdwg.mxu0
    %v407 = vsel %vm126, %v359, 0
    %409 = vmatpush.msra.mxu0 0.0
    %410 = vmatpush.msra.mxu0 0.0
    %411 = vmatpush.msra.mxu0 0.0
    %412 = vmatpush.msra.mxu0 0.0
    %413 = vmatpush.msra.mxu0 0.0
    %414 = vmatpush.msra.mxu0 0.0
    %415 = vmatpush.msra.mxu0 0.0
    %416 = vmatpush.msra.mxu0 0.0
    %417 = vmatpush.msra.mxu0 0.0
    %418 = vmatpush.msra.mxu0 0.0
    %419 = vmatpush.msra.mxu0 0.0
    %420 = vmatpush.msra.mxu0 0.0
    %421 = vmatpush.msra.mxu0 %v370
    %422 = vmatpush.msra.mxu0 %v369
    %423 = vmatpush.msra.mxu0 %v368
    %424 = vmatpush.msra.mxu0 %v367
    %425 = vmatmul.f32.gmra.mxu0 %v407
    %v426 = vpop.f32.mrf.mxu0
    %v427 = vadd.f32 0.0, %v426
    %428 = vdwg.mxu0
    %v430 = vsel %vm126, %v360, 0
    %432 = vmatpush.msra.mxu0 0.0
    %433 = vmatpush.msra.mxu0 0.0
    %434 = vmatpush.msra.mxu0 0.0
    %435 = vmatpush.msra.mxu0 0.0
    %436 = vmatpush.msra.mxu0 0.0
    %437 = vmatpush.msra.mxu0 0.0
    %438 = vmatpush.msra.mxu0 0.0
    %439 = vmatpush.msra.mxu0 0.0
    %440 = vmatpush.msra.mxu0 0.0
    %441 = vmatpush.msra.mxu0 0.0
    %442 = vmatpush.msra.mxu0 0.0
    %443 = vmatpush.msra.mxu0 0.0
    %444 = vmatpush.msra.mxu0 %v370
    %445 = vmatpush.msra.mxu0 %v369
    %446 = vmatpush.msra.mxu0 %v368
    %447 = vmatpush.msra.mxu0 %v367
    %448 = vmatmul.f32.gmra.mxu0 %v430
    %v449 = vpop.f32.mrf.mxu0
    %v450 = vadd.f32 0.0, %v449
    %451 = vdwg.mxu0
    %v453 = vsel %vm126, %v361, 0
    %455 = vmatpush.msra.mxu0 0.0
    %456 = vmatpush.msra.mxu0 0.0
    %457 = vmatpush.msra.mxu0 0.0
    %458 = vmatpush.msra.mxu0 0.0
    %459 = vmatpush.msra.mxu0 0.0
    %460 = vmatpush.msra.mxu0 0.0
    %461 = vmatpush.msra.mxu0 0.0
    %462 = vmatpush.msra.mxu0 0.0
    %463 = vmatpush.msra.mxu0 0.0
    %464 = vmatpush.msra.mxu0 0.0
    %465 = vmatpush.msra.mxu0 0.0
    %466 = vmatpush.msra.mxu0 0.0
    %467 = vmatpush.msra.mxu0 %v370
    %468 = vmatpush.msra.mxu0 %v369
    %469 = vmatpush.msra.mxu0 %v368
    %470 = vmatpush.msra.mxu0 %v367
    %471 = vmatmul.f32.gmra.mxu0 %v453
    %v472 = vpop.f32.mrf.mxu0
    %v473 = vadd.f32 0.0, %v472
    %474 = vdwg.mxu0
    %v475 = vmul.f32 %v427, %v404
    %v476 = vmul.f32 %v450, %v404
    %v477 = vmul.f32 %v473, %v404
    %479 = vrot.lane.b32.xlu0 %v427, 96
    %v480 = vpop.permute.xlu0 %479
    %v482 = vmul.f32 %v427, %v480
    %484 = vrot.lane.b32.xlu0 %v450, 96
    %v485 = vpop.permute.xlu0 %484
    %v487 = vmul.f32 %v450, %v485
    %v488 = vadd.f32 %v482, %v487
    %490 = vrot.lane.b32.xlu0 %v473, 96
    %v491 = vpop.permute.xlu0 %490
    %v493 = vmul.f32 %v473, %v491
    %v494 = vadd.f32 %v488, %v493
    %v495 = vadd.f32 %v494, %v404
    %s496 = scalar_lea.vmem [#allocation4], 32
    %v497 = vld [vmem:[%s496] sm:$0xff]
    %v498 = vld [vmem:[%s496 + $0x8] sm:$0xff]
    %v499 = vld [vmem:[%s496 + $0x10] sm:$0xff]
    %v500 = vld [vmem:[%s496 + $0x18] sm:$0xff]
    %v502 = vsel %vm126, %v475, 0
    %504 = vmatpush.msra.mxu0 0.0
    %505 = vmatpush.msra.mxu0 0.0
    %506 = vmatpush.msra.mxu0 0.0
    %507 = vmatpush.msra.mxu0 0.0
    %508 = vmatpush.msra.mxu0 0.0
    %509 = vmatpush.msra.mxu0 0.0
    %510 = vmatpush.msra.mxu0 0.0
    %511 = vmatpush.msra.mxu0 0.0
    %512 = vmatpush.msra.mxu0 0.0
    %513 = vmatpush.msra.mxu0 0.0
    %514 = vmatpush.msra.mxu0 0.0
    %515 = vmatpush.msra.mxu0 0.0
    %516 = vmatpush.msra.mxu0 %v500
    %517 = vmatpush.msra.mxu0 %v499
    %518 = vmatpush.msra.mxu0 %v498
    %519 = vmatpush.msra.mxu0 %v497
    %520 = vmatmul.f32.gmra.mxu0 %v502
    %v521 = vpop.f32.mrf.mxu0
    %v522 = vadd.f32 0.0, %v521
    %523 = vdwg.mxu0
    %v525 = vsel %vm126, %v476, 0
    %527 = vmatpush.msra.mxu0 0.0
    %528 = vmatpush.msra.mxu0 0.0
    %529 = vmatpush.msra.mxu0 0.0
    %530 = vmatpush.msra.mxu0 0.0
    %531 = vmatpush.msra.mxu0 0.0
    %532 = vmatpush.msra.mxu0 0.0
    %533 = vmatpush.msra.mxu0 0.0
    %534 = vmatpush.msra.mxu0 0.0
    %535 = vmatpush.msra.mxu0 0.0
    %536 = vmatpush.msra.mxu0 0.0
    %537 = vmatpush.msra.mxu0 0.0
    %538 = vmatpush.msra.mxu0 0.0
    %539 = vmatpush.msra.mxu0 %v500
    %540 = vmatpush.msra.mxu0 %v499
    %541 = vmatpush.msra.mxu0 %v498
    %542 = vmatpush.msra.mxu0 %v497
    %543 = vmatmul.f32.gmra.mxu0 %v525
    %v544 = vpop.f32.mrf.mxu0
    %v545 = vadd.f32 0.0, %v544
    %546 = vdwg.mxu0
    %v548 = vsel %vm126, %v477, 0
    %550 = vmatpush.msra.mxu0 0.0
    %551 = vmatpush.msra.mxu0 0.0
    %552 = vmatpush.msra.mxu0 0.0
    %553 = vmatpush.msra.mxu0 0.0
    %554 = vmatpush.msra.mxu0 0.0
    %555 = vmatpush.msra.mxu0 0.0
    %556 = vmatpush.msra.mxu0 0.0
    %557 = vmatpush.msra.mxu0 0.0
    %558 = vmatpush.msra.mxu0 0.0
    %559 = vmatpush.msra.mxu0 0.0
    %560 = vmatpush.msra.mxu0 0.0
    %561 = vmatpush.msra.mxu0 0.0
    %562 = vmatpush.msra.mxu0 %v500
    %563 = vmatpush.msra.mxu0 %v499
    %564 = vmatpush.msra.mxu0 %v498
    %565 = vmatpush.msra.mxu0 %v497
    %566 = vmatmul.f32.gmra.mxu0 %v548
    %v567 = vpop.f32.mrf.mxu0
    %v568 = vadd.f32 0.0, %v567
    %569 = vdwg.mxu0
    %v570 = vmul.f32 %v475, %v522
    %v571 = vmul.f32 %v476, %v545
    %v572 = vadd.f32 %v570, %v571
    %v573 = vmul.f32 %v477, %v568
    %v574 = vadd.f32 %v572, %v573
    %v575 = vmul.f32 %v522, %v522
    %v576 = vmul.f32 %v545, %v545
    %v577 = vadd.f32 %v575, %v576
    %v578 = vmul.f32 %v568, %v568
    %v579 = vadd.f32 %v577, %v578
    %v580 = vadd.f32 %v579, 1e-06
    %vm581 = vcmp.ge.f32.partialorder %v574, 0.0
    %v582 = vrcp.pop %v580
    %v583 = vmul.f32 %v580, %v582
    %v584 = vsub.f32 1.0, %v583
    %v585 = vmul.f32 %v582, %v584
    %v586 = vadd.f32 %v582, %v585
    %vm587 = vweird.f32 %v580
    %vm588 = vweird.f32 %v582
    %vm589 = vmor %vm587, %vm588
    %v590 = vsel %vm589, %v582, %v586
    %v591 = vand.u32 2147483647, %v580
    %vm592 = vcmp.eq.f32.partialorder %v591, 8.507059e+37
    %v593 = vand.u32 %v580, 2147483648
    %v594 = vor.u32 1.1754944e-38, %v593
    %v595 = vsel %vm592, %v594, %v590
    %v596 = vmul.f32 %v574, %v595
    %v597 = vsel %vm581, 0.0, %v596
    %v598 = vmul.f32 %v475, 0.2
    %v599 = vmul.f32 %v597, %v522
    %v600 = vsub.f32 %v475, %v599
    %v601 = vmul.f32 %v600, 0.8
    %v602 = vadd.f32 %v598, %v601
    %v603 = vmul.f32 %v476, 0.2
    %v604 = vmul.f32 %v597, %v545
    %v605 = vsub.f32 %v476, %v604
    %v606 = vmul.f32 %v605, 0.8
    %v607 = vadd.f32 %v603, %v606
    %v608 = vmul.f32 %v477, 0.2
    %v609 = vmul.f32 %v597, %v568
    %v610 = vsub.f32 %v477, %v609
    %v611 = vmul.f32 %v610, 0.8
    %v612 = vadd.f32 %v608, %v611
    %vm613 = vcmp.ge.f32.partialorder %v495, 0.0
    %v614 = vmul.f32 %v495, 0.2
    %v615 = vsel %vm613, %v495, %v614
    %v616 = vadd.f32 %v602, %v359
    %v617 = vadd.f32 %v607, %v360
    %v618 = vadd.f32 %v612, %v361
    %v619 = vadd.f32 %v615, %v365
    %v620 = vld [vmem:[#allocation6] sm:$0xff]
    %v621 = vld [vmem:[#allocation6 + $0x8] sm:$0xff]
    %v622 = vld [vmem:[#allocation6 + $0x10] sm:$0xff]
    %v623 = vld [vmem:[#allocation6 + $0x18] sm:$0xff]
    %v624 = vld [vmem:[#allocation7] sm:$0xff]
    %v625 = vld [vmem:[#allocation7 + $0x8] sm:$0xff]
    %v626 = vld [vmem:[#allocation7 + $0x10] sm:$0xff]
    %v627 = vld [vmem:[#allocation7 + $0x18] sm:$0xff]
    %v628 = vld [vmem:[%s9] sm:$0x1]
    %v630 = vperm.slane %v628, 0
    %633 = vrot.lane.b32.xlu0 %v619, 96
    %v634 = vpop.permute.xlu0 %633
    %v635 = vsel %vm126, %v634, 0
    %637 = vmatpush.msra.mxu0 0.0
    %638 = vmatpush.msra.mxu0 0.0
    %639 = vmatpush.msra.mxu0 0.0
    %640 = vmatpush.msra.mxu0 0.0
    %641 = vmatpush.msra.mxu0 0.0
    %642 = vmatpush.msra.mxu0 0.0
    %643 = vmatpush.msra.mxu0 0.0
    %644 = vmatpush.msra.mxu0 0.0
    %645 = vmatpush.msra.mxu0 0.0
    %646 = vmatpush.msra.mxu0 0.0
    %647 = vmatpush.msra.mxu0 0.0
    %648 = vmatpush.msra.mxu0 0.0
    %649 = vmatpush.msra.mxu0 %v627
    %650 = vmatpush.msra.mxu0 %v626
    %651 = vmatpush.msra.mxu0 %v625
    %652 = vmatpush.msra.mxu0 %v624
    %653 = vmatmul.f32.gmra.mxu0 %v635
    %v654 = vpop.f32.mrf.mxu0
    %v655 = vadd.f32 %v630, %v654
    %656 = vdwg.mxu0
    %v658 = vsel %vm126, %v616, 0
    %660 = vmatpush.msra.mxu0 0.0
    %661 = vmatpush.msra.mxu0 0.0
    %662 = vmatpush.msra.mxu0 0.0
    %663 = vmatpush.msra.mxu0 0.0
    %664 = vmatpush.msra.mxu0 0.0
    %665 = vmatpush.msra.mxu0 0.0
    %666 = vmatpush.msra.mxu0 0.0
    %667 = vmatpush.msra.mxu0 0.0
    %668 = vmatpush.msra.mxu0 0.0
    %669 = vmatpush.msra.mxu0 0.0
    %670 = vmatpush.msra.mxu0 0.0
    %671 = vmatpush.msra.mxu0 0.0
    %672 = vmatpush.msra.mxu0 %v623
    %673 = vmatpush.msra.mxu0 %v622
    %674 = vmatpush.msra.mxu0 %v621
    %675 = vmatpush.msra.mxu0 %v620
    %676 = vmatmul.f32.gmra.mxu0 %v658
    %v677 = vpop.f32.mrf.mxu0
    %v678 = vadd.f32 0.0, %v677
    %679 = vdwg.mxu0
    %v681 = vsel %vm126, %v617, 0
    %683 = vmatpush.msra.mxu0 0.0
    %684 = vmatpush.msra.mxu0 0.0
    %685 = vmatpush.msra.mxu0 0.0
    %686 = vmatpush.msra.mxu0 0.0
    %687 = vmatpush.msra.mxu0 0.0
    %688 = vmatpush.msra.mxu0 0.0
    %689 = vmatpush.msra.mxu0 0.0
    %690 = vmatpush.msra.mxu0 0.0
    %691 = vmatpush.msra.mxu0 0.0
    %692 = vmatpush.msra.mxu0 0.0
    %693 = vmatpush.msra.mxu0 0.0
    %694 = vmatpush.msra.mxu0 0.0
    %695 = vmatpush.msra.mxu0 %v623
    %696 = vmatpush.msra.mxu0 %v622
    %697 = vmatpush.msra.mxu0 %v621
    %698 = vmatpush.msra.mxu0 %v620
    %699 = vmatmul.f32.gmra.mxu0 %v681
    %v700 = vpop.f32.mrf.mxu0
    %v701 = vadd.f32 0.0, %v700
    %702 = vdwg.mxu0
    %v704 = vsel %vm126, %v618, 0
    %706 = vmatpush.msra.mxu0 0.0
    %707 = vmatpush.msra.mxu0 0.0
    %708 = vmatpush.msra.mxu0 0.0
    %709 = vmatpush.msra.mxu0 0.0
    %710 = vmatpush.msra.mxu0 0.0
    %711 = vmatpush.msra.mxu0 0.0
    %712 = vmatpush.msra.mxu0 0.0
    %713 = vmatpush.msra.mxu0 0.0
    %714 = vmatpush.msra.mxu0 0.0
    %715 = vmatpush.msra.mxu0 0.0
    %716 = vmatpush.msra.mxu0 0.0
    %717 = vmatpush.msra.mxu0 0.0
    %718 = vmatpush.msra.mxu0 %v623
    %719 = vmatpush.msra.mxu0 %v622
    %720 = vmatpush.msra.mxu0 %v621
    %721 = vmatpush.msra.mxu0 %v620
    %722 = vmatmul.f32.gmra.mxu0 %v704
    %v723 = vpop.f32.mrf.mxu0
    %v724 = vadd.f32 0.0, %v723
    %725 = vdwg.mxu0
    %v726 = vmul.f32 %v678, %v655
    %v727 = vmul.f32 %v701, %v655
    %v728 = vmul.f32 %v724, %v655
    %730 = vrot.lane.b32.xlu0 %v678, 112
    %v731 = vpop.permute.xlu0 %730
    %v733 = vmul.f32 %v678, %v731
    %735 = vrot.lane.b32.xlu0 %v701, 112
    %v736 = vpop.permute.xlu0 %735
    %v738 = vmul.f32 %v701, %v736
    %v739 = vadd.f32 %v733, %v738
    %741 = vrot.lane.b32.xlu0 %v724, 112
    %v742 = vpop.permute.xlu0 %741
    %v744 = vmul.f32 %v724, %v742
    %v745 = vadd.f32 %v739, %v744
    %v746 = vadd.f32 %v745, %v655
    %748 = vrot.lane.b32.xlu0 %v727, 16
    %v749 = vpop.permute.xlu0 %748
    %752 = vrot.lane.b32.xlu0 %v728, 32
    %v753 = vpop.permute.xlu0 %752
    %756 = vrot.lane.b32.xlu0 %v746, 32
    %v757 = vpop.permute.xlu0 %756
    %v759 = vsel %vm104, %v726, %v749
    %v760 = vsel %vm126, %v759, %v753
    %vm761 = vcmask 392192
    %v762 = vsel %vm761, %v760, %v757
    %vm763 = vcmask 523264
    %764 = vst.msk [vmem:[%s10] sm:$0xff] %vm763, %v762
    // Predicated region
    $region58: #{latent_diffusion_forward.1} parent=1 // pred_check
      _
    $region59: #{latent_diffusion_forward.1} parent=1 // pred_check_branch
      %766 = sbr.rel (0) target = $region61
    $region60: #{latent_diffusion_forward.1} parent=1 // pred_region
      _
    $region61: #{latent_diffusion_forward.1} parent=1 // pred_fallthru
      _
    // Predicated region
    $region62: #{latent_diffusion_forward.1} parent=1 // pred_check
      _
    $region63: #{latent_diffusion_forward.1} parent=1 // pred_check_branch
      %768 = sbr.rel (0) target = $region65
    $region64: #{latent_diffusion_forward.1} parent=1 // pred_region
      _
    $region65: #{latent_diffusion_forward.1} parent=1 // pred_fallthru
      _
    %769 = vsyncpa [#allocation3], 1
    %770 = vsyncpa [#allocation5], 1
    %771 = vsyncpa [#allocation8], 1

</llo_original>
